<compile_context>
chip_gen: v6e
topology: v6e:2x2x1
jax: 0.10.0
libtpu: 0.0.40
codegen_flags: <defaults>
</compile_context>

<pallas_src>
import functools

import jax
import jax.numpy as jnp
import numpy as np
from jax.experimental import pallas as pl
from jax.experimental.pallas import tpu as pltpu

EPS = 1e-5


def _sepconv_kernel(x_ref, wdw_ref, mask_ref, gamma_ref, beta_ref, wpwt_ref,
                    out_ref, *, width):
    # x_ref    : (N, Cin, H*W)  input, spatial flattened onto the lane axis, f32
    # wdw_ref  : (9, Cin, 1)    depthwise 3x3 taps, tap index = kh*3 + kw
    # mask_ref : (9, 1, H*W)    per-tap border-validity masks (zero padding)
    # gamma_ref: (Cin, 1)       BN scale
    # beta_ref : (Cin, 1)       BN shift
    # wpwt_ref : (Cout, Cin)    pointwise 1x1 weights, transposed
    # out_ref  : (N, Cout, H*W)
    x = x_ref[...]
    n_batch, _, hw = x.shape

    # ---- depthwise 3x3 conv (stride=1, pad=1, dilation=1, groups=Cin, no bias)
    # One load + lane rolls for the 8 shifted taps; masks zero out the halo.
    acc = jnp.zeros_like(x)
    for kh in range(3):
        for kw in range(3):
            dh, dw = kh - 1, kw - 1
            tap = kh * 3 + kw
            mw = mask_ref[tap] * wdw_ref[tap]            # (1,HW)*(Cin,1)->(Cin,HW)
            if dh == 0 and dw == 0:
                shifted = x
            else:
                shift = (-(dh * width + dw)) % hw        # static python int
                shifted = pltpu.roll(x, shift=shift, axis=2)
            acc = acc + shifted * mw

    # ---- BatchNorm2d (training mode => biased batch variance), fused stats
    denom = 1.0 / float(n_batch * hw)
    s = jnp.sum(jnp.sum(acc, axis=2, keepdims=True), axis=0, keepdims=True)
    ss = jnp.sum(jnp.sum(acc * acc, axis=2, keepdims=True), axis=0, keepdims=True)
    mean = s * denom                                     # (1, Cin, 1)
    var = jnp.maximum(ss * denom - mean * mean, 0.0)     # clamp cancellation
    scale = gamma_ref[...] * jax.lax.rsqrt(var + EPS)    # (1, Cin, 1)
    shift_b = beta_ref[...] - mean * scale
    yn = acc * scale + shift_b                           # (N, Cin, HW)

    # ---- pointwise 1x1 conv (Cin -> Cout, no bias) on the MXU
    wpwt = wpwt_ref[...]                                 # (Cout, Cin)
    for n in range(n_batch):
        out_ref[n] = jnp.dot(wpwt, yn[n], preferred_element_type=jnp.float32)


def _border_masks(h, w):
    """(9, 1, H*W) f32 validity masks for the nine 3x3 taps (zero padding)."""
    hh, ww = np.meshgrid(np.arange(h), np.arange(w), indexing="ij")
    masks = []
    for kh in range(3):
        for kw in range(3):
            dh, dw = kh - 1, kw - 1
            valid = ((hh + dh >= 0) & (hh + dh < h) &
                     (ww + dw >= 0) & (ww + dw < w))
            masks.append(valid.reshape(h * w).astype(np.float32))
    return np.stack(masks)[:, None, :]


def separable_conv2d(x_nchw, w_dw, gamma, beta, w_pw):
    """x_nchw: (N, Cin, H, W); w_dw: (3,3,Cin); gamma/beta: (Cin,); w_pw: (Cin, Cout)."""
    n, cin, h, w = x_nchw.shape
    cout = w_pw.shape[1]
    hw = h * w

    x3 = x_nchw.reshape(n, cin, hw).astype(jnp.float32)      # free reshape, no transpose/pad
    wdw9 = w_dw.reshape(9, cin, 1).astype(jnp.float32)       # tap-major
    masks = jnp.asarray(_border_masks(h, w))                 # compile-time constant
    gamma2 = gamma.reshape(cin, 1).astype(jnp.float32)
    beta2 = beta.reshape(cin, 1).astype(jnp.float32)
    wpwt = jnp.transpose(w_pw).astype(jnp.float32)           # (Cout, Cin), tiny

    out3 = pl.pallas_call(
        functools.partial(_sepconv_kernel, width=w),
        out_shape=jax.ShapeDtypeStruct((n, cout, hw), jnp.float32),
        grid=(1,),
        in_specs=[
            pl.BlockSpec((n, cin, hw), lambda i: (0, 0, 0)),
            pl.BlockSpec((9, cin, 1), lambda i: (0, 0, 0)),
            pl.BlockSpec((9, 1, hw), lambda i: (0, 0, 0)),
            pl.BlockSpec((cin, 1), lambda i: (0, 0)),
            pl.BlockSpec((cin, 1), lambda i: (0, 0)),
            pl.BlockSpec((cout, cin), lambda i: (0, 0)),
        ],
        out_specs=pl.BlockSpec((n, cout, hw), lambda i: (0, 0, 0)),
        compiler_params=pltpu.CompilerParams(
            dimension_semantics=("arbitrary",)),
    )(x3, wdw9, masks, gamma2, beta2, wpwt)

    # TODO(synk): for large N*H*W, replace grid=(1,) whole-tensor residency with
    # an N/H-stripe grid (two-pass BN stats over an 'arbitrary' axis, 'parallel'
    # batch axis) so DMA pipelining kicks in and VMEM stays bounded on v7x.
    return out3.reshape(n, cout, h, w)


def _reference(x_nchw, w_dw, gamma, beta, w_pw):
    """Pure-JAX reference matching PyTorch SeparableConv2d.forward (train-mode BN)."""
    cin = x_nchw.shape[1]
    wt = jnp.transpose(w_dw, (2, 0, 1))[:, None, :, :]       # OIHW, O=Cin, I=1
    y = jax.lax.conv_general_dilated(
        x_nchw, wt, window_strides=(1, 1), padding=((1, 1), (1, 1)),
        dimension_numbers=("NCHW", "OIHW", "NCHW"), feature_group_count=cin)
    mean = jnp.mean(y, axis=(0, 2, 3), keepdims=True)
    var = jnp.mean((y - mean) ** 2, axis=(0, 2, 3), keepdims=True)
    yn = (y - mean) * jax.lax.rsqrt(var + EPS) \
        * gamma[None, :, None, None] + beta[None, :, None, None]
    return jnp.einsum("nchw,cd->ndhw", yn, w_pw)


if __name__ == "__main__":
    key = jax.random.PRNGKey(0)
    k_x, k_dw, k_pw = jax.random.split(key, 3)

    N, Cin, H, W = 2, 4, 16, 16
    Cout = 8

    x = jax.random.normal(k_x, (N, Cin, H, W), dtype=jnp.float32)
    # PyTorch param shapes: conv1.weight (Cin,1,3,3) -> stored here as (3,3,Cin);
    # pointwise.weight (Cout,Cin,1,1) -> stored here as (Cin,Cout); bias=False.
    w_dw = jax.random.normal(k_dw, (3, 3, Cin), dtype=jnp.float32) * 0.1
    w_pw = jax.random.normal(k_pw, (Cin, Cout), dtype=jnp.float32) * 0.1
    gamma = jnp.ones((Cin,), jnp.float32)   # BatchNorm2d default affine init
    beta = jnp.zeros((Cin,), jnp.float32)

    out = separable_conv2d(x, w_dw, gamma, beta, w_pw)
    out = jax.block_until_ready(out)

    ref = jax.block_until_ready(_reference(x, w_dw, gamma, beta, w_pw))
    assert out.shape == (N, Cout, H, W)
    np.testing.assert_allclose(np.asarray(out), np.asarray(ref), atol=1e-4, rtol=1e-4)

    print("KERNEL_OK")
</pallas_src>

<mosaic_0001>
module attributes {stable_mosaic.version = 11 : i64} {
  func.func @_sepconv_kernel(%arg0: i32, %arg1: memref<2x4x256xf32, #tpu.memory_space<vmem>>, %arg2: memref<9x4x1xf32, #tpu.memory_space<vmem>>, %arg3: memref<9x1x256xf32, #tpu.memory_space<vmem>>, %arg4: memref<4x1xf32, #tpu.memory_space<vmem>>, %arg5: memref<4x1xf32, #tpu.memory_space<vmem>>, %arg6: memref<8x4xf32, #tpu.memory_space<vmem>>, %arg7: memref<2x8x256xf32, #tpu.memory_space<vmem>>) attributes {dimension_semantics = [#tpu.dimension_semantics<arbitrary>], iteration_bounds = array<i64: 1>, scalar_prefetch = 0 : i64, scratch_operands = 0 : i64, tpu.core_type = #tpu.core_type<tc>, window_params = [{pipeline_mode = #tpu.pipeline_mode<synchronous>, transform_indices = @transform_0, window_bounds = array<i64: 2, 4, 256>}, {pipeline_mode = #tpu.pipeline_mode<synchronous>, transform_indices = @transform_1, window_bounds = array<i64: 9, 4, 1>}, {pipeline_mode = #tpu.pipeline_mode<synchronous>, transform_indices = @transform_2, window_bounds = array<i64: 9, 1, 256>}, {pipeline_mode = #tpu.pipeline_mode<synchronous>, transform_indices = @transform_3, window_bounds = array<i64: 4, 1>}, {pipeline_mode = #tpu.pipeline_mode<synchronous>, transform_indices = @transform_4, window_bounds = array<i64: 4, 1>}, {pipeline_mode = #tpu.pipeline_mode<synchronous>, transform_indices = @transform_5, window_bounds = array<i64: 8, 4>}, {pipeline_mode = #tpu.pipeline_mode<synchronous>, transform_indices = @transform_6, window_bounds = array<i64: 2, 8, 256>}]} {
    %c0 = arith.constant 0 : index
    %c0_0 = arith.constant 0 : index
    %c0_1 = arith.constant 0 : index
    %0 = vector.load %arg1[%c0, %c0_0, %c0_1] : memref<2x4x256xf32, #tpu.memory_space<vmem>>, vector<2x4x256xf32>
    %cst = arith.constant 0.000000e+00 : f32
    %1 = vector.broadcast %cst : f32 to vector<2x4x256xf32>
    %c0_2 = arith.constant 0 : index
    %c0_3 = arith.constant 0 : index
    %c0_4 = arith.constant 0 : index
    %2 = vector.load %arg3[%c0_2, %c0_3, %c0_4] : memref<9x1x256xf32, #tpu.memory_space<vmem>>, vector<1x1x256xf32>
    %3 = vector.shape_cast %2 : vector<1x1x256xf32> to vector<1x256xf32>
    %c0_5 = arith.constant 0 : index
    %c0_6 = arith.constant 0 : index
    %c0_7 = arith.constant 0 : index
    %4 = vector.load %arg2[%c0_5, %c0_6, %c0_7] : memref<9x4x1xf32, #tpu.memory_space<vmem>>, vector<1x4x1xf32>
    %5 = vector.shape_cast %4 : vector<1x4x1xf32> to vector<4x1xf32>
    %6 = vector.broadcast %3 : vector<1x256xf32> to vector<4x256xf32>
    %7 = vector.broadcast %5 : vector<4x1xf32> to vector<4x256xf32>
    %8 = arith.mulf %6, %7 : vector<4x256xf32>
    %c17_i32 = arith.constant 17 : i32
    %9 = tpu.dynamic_rotate %0 by %c17_i32 dim 2 : vector<2x4x256xf32>, i32 -> vector<2x4x256xf32>
    %10 = vector.shape_cast %8 : vector<4x256xf32> to vector<1x4x256xf32>
    %11 = vector.broadcast %10 : vector<1x4x256xf32> to vector<2x4x256xf32>
    %12 = arith.mulf %9, %11 : vector<2x4x256xf32>
    %13 = arith.addf %1, %12 : vector<2x4x256xf32>
    %c1 = arith.constant 1 : index
    %c0_8 = arith.constant 0 : index
    %c0_9 = arith.constant 0 : index
    %14 = vector.load %arg3[%c1, %c0_8, %c0_9] : memref<9x1x256xf32, #tpu.memory_space<vmem>>, vector<1x1x256xf32>
    %15 = vector.shape_cast %14 : vector<1x1x256xf32> to vector<1x256xf32>
    %c1_10 = arith.constant 1 : index
    %c0_11 = arith.constant 0 : index
    %c0_12 = arith.constant 0 : index
    %16 = vector.load %arg2[%c1_10, %c0_11, %c0_12] : memref<9x4x1xf32, #tpu.memory_space<vmem>>, vector<1x4x1xf32>
    %17 = vector.shape_cast %16 : vector<1x4x1xf32> to vector<4x1xf32>
    %18 = vector.broadcast %15 : vector<1x256xf32> to vector<4x256xf32>
    %19 = vector.broadcast %17 : vector<4x1xf32> to vector<4x256xf32>
    %20 = arith.mulf %18, %19 : vector<4x256xf32>
    %c16_i32 = arith.constant 16 : i32
    %21 = tpu.dynamic_rotate %0 by %c16_i32 dim 2 : vector<2x4x256xf32>, i32 -> vector<2x4x256xf32>
    %22 = vector.shape_cast %20 : vector<4x256xf32> to vector<1x4x256xf32>
    %23 = vector.broadcast %22 : vector<1x4x256xf32> to vector<2x4x256xf32>
    %24 = arith.mulf %21, %23 : vector<2x4x256xf32>
    %25 = arith.addf %13, %24 : vector<2x4x256xf32>
    %c2 = arith.constant 2 : index
    %c0_13 = arith.constant 0 : index
    %c0_14 = arith.constant 0 : index
    %26 = vector.load %arg3[%c2, %c0_13, %c0_14] : memref<9x1x256xf32, #tpu.memory_space<vmem>>, vector<1x1x256xf32>
    %27 = vector.shape_cast %26 : vector<1x1x256xf32> to vector<1x256xf32>
    %c2_15 = arith.constant 2 : index
    %c0_16 = arith.constant 0 : index
    %c0_17 = arith.constant 0 : index
    %28 = vector.load %arg2[%c2_15, %c0_16, %c0_17] : memref<9x4x1xf32, #tpu.memory_space<vmem>>, vector<1x4x1xf32>
    %29 = vector.shape_cast %28 : vector<1x4x1xf32> to vector<4x1xf32>
    %30 = vector.broadcast %27 : vector<1x256xf32> to vector<4x256xf32>
    %31 = vector.broadcast %29 : vector<4x1xf32> to vector<4x256xf32>
    %32 = arith.mulf %30, %31 : vector<4x256xf32>
    %c15_i32 = arith.constant 15 : i32
    %33 = tpu.dynamic_rotate %0 by %c15_i32 dim 2 : vector<2x4x256xf32>, i32 -> vector<2x4x256xf32>
    %34 = vector.shape_cast %32 : vector<4x256xf32> to vector<1x4x256xf32>
    %35 = vector.broadcast %34 : vector<1x4x256xf32> to vector<2x4x256xf32>
    %36 = arith.mulf %33, %35 : vector<2x4x256xf32>
    %37 = arith.addf %25, %36 : vector<2x4x256xf32>
    %c3 = arith.constant 3 : index
    %c0_18 = arith.constant 0 : index
    %c0_19 = arith.constant 0 : index
    %38 = vector.load %arg3[%c3, %c0_18, %c0_19] : memref<9x1x256xf32, #tpu.memory_space<vmem>>, vector<1x1x256xf32>
    %39 = vector.shape_cast %38 : vector<1x1x256xf32> to vector<1x256xf32>
    %c3_20 = arith.constant 3 : index
    %c0_21 = arith.constant 0 : index
    %c0_22 = arith.constant 0 : index
    %40 = vector.load %arg2[%c3_20, %c0_21, %c0_22] : memref<9x4x1xf32, #tpu.memory_space<vmem>>, vector<1x4x1xf32>
    %41 = vector.shape_cast %40 : vector<1x4x1xf32> to vector<4x1xf32>
    %42 = vector.broadcast %39 : vector<1x256xf32> to vector<4x256xf32>
    %43 = vector.broadcast %41 : vector<4x1xf32> to vector<4x256xf32>
    %44 = arith.mulf %42, %43 : vector<4x256xf32>
    %c1_i32 = arith.constant 1 : i32
    %45 = tpu.dynamic_rotate %0 by %c1_i32 dim 2 : vector<2x4x256xf32>, i32 -> vector<2x4x256xf32>
    %46 = vector.shape_cast %44 : vector<4x256xf32> to vector<1x4x256xf32>
    %47 = vector.broadcast %46 : vector<1x4x256xf32> to vector<2x4x256xf32>
    %48 = arith.mulf %45, %47 : vector<2x4x256xf32>
    %49 = arith.addf %37, %48 : vector<2x4x256xf32>
    %c4 = arith.constant 4 : index
    %c0_23 = arith.constant 0 : index
    %c0_24 = arith.constant 0 : index
    %50 = vector.load %arg3[%c4, %c0_23, %c0_24] : memref<9x1x256xf32, #tpu.memory_space<vmem>>, vector<1x1x256xf32>
    %51 = vector.shape_cast %50 : vector<1x1x256xf32> to vector<1x256xf32>
    %c4_25 = arith.constant 4 : index
    %c0_26 = arith.constant 0 : index
    %c0_27 = arith.constant 0 : index
    %52 = vector.load %arg2[%c4_25, %c0_26, %c0_27] : memref<9x4x1xf32, #tpu.memory_space<vmem>>, vector<1x4x1xf32>
    %53 = vector.shape_cast %52 : vector<1x4x1xf32> to vector<4x1xf32>
    %54 = vector.broadcast %51 : vector<1x256xf32> to vector<4x256xf32>
    %55 = vector.broadcast %53 : vector<4x1xf32> to vector<4x256xf32>
    %56 = arith.mulf %54, %55 : vector<4x256xf32>
    %57 = vector.shape_cast %56 : vector<4x256xf32> to vector<1x4x256xf32>
    %58 = vector.broadcast %57 : vector<1x4x256xf32> to vector<2x4x256xf32>
    %59 = arith.mulf %0, %58 : vector<2x4x256xf32>
    %60 = arith.addf %49, %59 : vector<2x4x256xf32>
    %c5 = arith.constant 5 : index
    %c0_28 = arith.constant 0 : index
    %c0_29 = arith.constant 0 : index
    %61 = vector.load %arg3[%c5, %c0_28, %c0_29] : memref<9x1x256xf32, #tpu.memory_space<vmem>>, vector<1x1x256xf32>
    %62 = vector.shape_cast %61 : vector<1x1x256xf32> to vector<1x256xf32>
    %c5_30 = arith.constant 5 : index
    %c0_31 = arith.constant 0 : index
    %c0_32 = arith.constant 0 : index
    %63 = vector.load %arg2[%c5_30, %c0_31, %c0_32] : memref<9x4x1xf32, #tpu.memory_space<vmem>>, vector<1x4x1xf32>
    %64 = vector.shape_cast %63 : vector<1x4x1xf32> to vector<4x1xf32>
    %65 = vector.broadcast %62 : vector<1x256xf32> to vector<4x256xf32>
    %66 = vector.broadcast %64 : vector<4x1xf32> to vector<4x256xf32>
    %67 = arith.mulf %65, %66 : vector<4x256xf32>
    %c255_i32 = arith.constant 255 : i32
    %68 = tpu.dynamic_rotate %0 by %c255_i32 dim 2 : vector<2x4x256xf32>, i32 -> vector<2x4x256xf32>
    %69 = vector.shape_cast %67 : vector<4x256xf32> to vector<1x4x256xf32>
    %70 = vector.broadcast %69 : vector<1x4x256xf32> to vector<2x4x256xf32>
    %71 = arith.mulf %68, %70 : vector<2x4x256xf32>
    %72 = arith.addf %60, %71 : vector<2x4x256xf32>
    %c6 = arith.constant 6 : index
    %c0_33 = arith.constant 0 : index
    %c0_34 = arith.constant 0 : index
    %73 = vector.load %arg3[%c6, %c0_33, %c0_34] : memref<9x1x256xf32, #tpu.memory_space<vmem>>, vector<1x1x256xf32>
    %74 = vector.shape_cast %73 : vector<1x1x256xf32> to vector<1x256xf32>
    %c6_35 = arith.constant 6 : index
    %c0_36 = arith.constant 0 : index
    %c0_37 = arith.constant 0 : index
    %75 = vector.load %arg2[%c6_35, %c0_36, %c0_37] : memref<9x4x1xf32, #tpu.memory_space<vmem>>, vector<1x4x1xf32>
    %76 = vector.shape_cast %75 : vector<1x4x1xf32> to vector<4x1xf32>
    %77 = vector.broadcast %74 : vector<1x256xf32> to vector<4x256xf32>
    %78 = vector.broadcast %76 : vector<4x1xf32> to vector<4x256xf32>
    %79 = arith.mulf %77, %78 : vector<4x256xf32>
    %c241_i32 = arith.constant 241 : i32
    %80 = tpu.dynamic_rotate %0 by %c241_i32 dim 2 : vector<2x4x256xf32>, i32 -> vector<2x4x256xf32>
    %81 = vector.shape_cast %79 : vector<4x256xf32> to vector<1x4x256xf32>
    %82 = vector.broadcast %81 : vector<1x4x256xf32> to vector<2x4x256xf32>
    %83 = arith.mulf %80, %82 : vector<2x4x256xf32>
    %84 = arith.addf %72, %83 : vector<2x4x256xf32>
    %c7 = arith.constant 7 : index
    %c0_38 = arith.constant 0 : index
    %c0_39 = arith.constant 0 : index
    %85 = vector.load %arg3[%c7, %c0_38, %c0_39] : memref<9x1x256xf32, #tpu.memory_space<vmem>>, vector<1x1x256xf32>
    %86 = vector.shape_cast %85 : vector<1x1x256xf32> to vector<1x256xf32>
    %c7_40 = arith.constant 7 : index
    %c0_41 = arith.constant 0 : index
    %c0_42 = arith.constant 0 : index
    %87 = vector.load %arg2[%c7_40, %c0_41, %c0_42] : memref<9x4x1xf32, #tpu.memory_space<vmem>>, vector<1x4x1xf32>
    %88 = vector.shape_cast %87 : vector<1x4x1xf32> to vector<4x1xf32>
    %89 = vector.broadcast %86 : vector<1x256xf32> to vector<4x256xf32>
    %90 = vector.broadcast %88 : vector<4x1xf32> to vector<4x256xf32>
    %91 = arith.mulf %89, %90 : vector<4x256xf32>
    %c240_i32 = arith.constant 240 : i32
    %92 = tpu.dynamic_rotate %0 by %c240_i32 dim 2 : vector<2x4x256xf32>, i32 -> vector<2x4x256xf32>
    %93 = vector.shape_cast %91 : vector<4x256xf32> to vector<1x4x256xf32>
    %94 = vector.broadcast %93 : vector<1x4x256xf32> to vector<2x4x256xf32>
    %95 = arith.mulf %92, %94 : vector<2x4x256xf32>
    %96 = arith.addf %84, %95 : vector<2x4x256xf32>
    %c8 = arith.constant 8 : index
    %c0_43 = arith.constant 0 : index
    %c0_44 = arith.constant 0 : index
    %97 = vector.load %arg3[%c8, %c0_43, %c0_44] : memref<9x1x256xf32, #tpu.memory_space<vmem>>, vector<1x1x256xf32>
    %98 = vector.shape_cast %97 : vector<1x1x256xf32> to vector<1x256xf32>
    %c8_45 = arith.constant 8 : index
    %c0_46 = arith.constant 0 : index
    %c0_47 = arith.constant 0 : index
    %99 = vector.load %arg2[%c8_45, %c0_46, %c0_47] : memref<9x4x1xf32, #tpu.memory_space<vmem>>, vector<1x4x1xf32>
    %100 = vector.shape_cast %99 : vector<1x4x1xf32> to vector<4x1xf32>
    %101 = vector.broadcast %98 : vector<1x256xf32> to vector<4x256xf32>
    %102 = vector.broadcast %100 : vector<4x1xf32> to vector<4x256xf32>
    %103 = arith.mulf %101, %102 : vector<4x256xf32>
    %c239_i32 = arith.constant 239 : i32
    %104 = tpu.dynamic_rotate %0 by %c239_i32 dim 2 : vector<2x4x256xf32>, i32 -> vector<2x4x256xf32>
    %105 = vector.shape_cast %103 : vector<4x256xf32> to vector<1x4x256xf32>
    %106 = vector.broadcast %105 : vector<1x4x256xf32> to vector<2x4x256xf32>
    %107 = arith.mulf %104, %106 : vector<2x4x256xf32>
    %108 = arith.addf %96, %107 : vector<2x4x256xf32>
    %cst_48 = arith.constant dense<0.000000e+00> : vector<2x4xf32>
    %109 = vector.multi_reduction <add>, %108, %cst_48 [2] : vector<2x4x256xf32> to vector<2x4xf32>
    %110 = vector.shape_cast %109 : vector<2x4xf32> to vector<2x4x1xf32>
    %cst_49 = arith.constant dense<0.000000e+00> : vector<4x1xf32>
    %111 = vector.multi_reduction <add>, %110, %cst_49 [0] : vector<2x4x1xf32> to vector<4x1xf32>
    %112 = vector.shape_cast %111 : vector<4x1xf32> to vector<1x4x1xf32>
    %113 = arith.mulf %108, %108 : vector<2x4x256xf32>
    %cst_50 = arith.constant dense<0.000000e+00> : vector<2x4xf32>
    %114 = vector.multi_reduction <add>, %113, %cst_50 [2] : vector<2x4x256xf32> to vector<2x4xf32>
    %115 = vector.shape_cast %114 : vector<2x4xf32> to vector<2x4x1xf32>
    %cst_51 = arith.constant dense<0.000000e+00> : vector<4x1xf32>
    %116 = vector.multi_reduction <add>, %115, %cst_51 [0] : vector<2x4x1xf32> to vector<4x1xf32>
    %117 = vector.shape_cast %116 : vector<4x1xf32> to vector<1x4x1xf32>
    %cst_52 = arith.constant 0.001953125 : f32
    %118 = vector.broadcast %cst_52 : f32 to vector<1x4x1xf32>
    %119 = arith.mulf %112, %118 : vector<1x4x1xf32>
    %cst_53 = arith.constant 0.001953125 : f32
    %120 = vector.broadcast %cst_53 : f32 to vector<1x4x1xf32>
    %121 = arith.mulf %117, %120 : vector<1x4x1xf32>
    %122 = arith.mulf %119, %119 : vector<1x4x1xf32>
    %123 = arith.subf %121, %122 : vector<1x4x1xf32>
    %cst_54 = arith.constant 0.000000e+00 : f32
    %124 = vector.broadcast %cst_54 : f32 to vector<1x4x1xf32>
    %125 = arith.maximumf %123, %124 : vector<1x4x1xf32>
    %c0_55 = arith.constant 0 : index
    %c0_56 = arith.constant 0 : index
    %126 = vector.load %arg4[%c0_55, %c0_56] : memref<4x1xf32, #tpu.memory_space<vmem>>, vector<4x1xf32>
    %cst_57 = arith.constant 9.99999974E-6 : f32
    %127 = vector.broadcast %cst_57 : f32 to vector<1x4x1xf32>
    %128 = arith.addf %125, %127 : vector<1x4x1xf32>
    %129 = math.rsqrt %128 : vector<1x4x1xf32>
    %130 = vector.shape_cast %126 : vector<4x1xf32> to vector<1x4x1xf32>
    %131 = arith.mulf %130, %129 : vector<1x4x1xf32>
    %c0_58 = arith.constant 0 : index
    %c0_59 = arith.constant 0 : index
    %132 = vector.load %arg5[%c0_58, %c0_59] : memref<4x1xf32, #tpu.memory_space<vmem>>, vector<4x1xf32>
    %133 = arith.mulf %119, %131 : vector<1x4x1xf32>
    %134 = vector.shape_cast %132 : vector<4x1xf32> to vector<1x4x1xf32>
    %135 = arith.subf %134, %133 : vector<1x4x1xf32>
    %136 = vector.broadcast %131 : vector<1x4x1xf32> to vector<2x4x256xf32>
    %137 = arith.mulf %108, %136 : vector<2x4x256xf32>
    %138 = vector.broadcast %135 : vector<1x4x1xf32> to vector<2x4x256xf32>
    %139 = arith.addf %137, %138 : vector<2x4x256xf32>
    %c0_60 = arith.constant 0 : index
    %c0_61 = arith.constant 0 : index
    %140 = vector.load %arg6[%c0_60, %c0_61] : memref<8x4xf32, #tpu.memory_space<vmem>>, vector<8x4xf32>
    %141 = vector.extract_strided_slice %139 {offsets = [0, 0, 0], sizes = [1, 4, 256], strides = [1, 1, 1]} : vector<2x4x256xf32> to vector<1x4x256xf32>
    %142 = vector.shape_cast %141 : vector<1x4x256xf32> to vector<4x256xf32>
    %cst_62 = arith.constant dense<0.000000e+00> : vector<8x256xf32>
    %143 = tpu.matmul %140, %142, %cst_62 {dimension_numbers = #tpu.dot_dimension_numbers<[1], [0], [0], [1], [0, 0, 1, 1], [], []>} : vector<8x4xf32>, vector<4x256xf32>, vector<8x256xf32> -> vector<8x256xf32>
    %c0_63 = arith.constant 0 : index
    %c0_64 = arith.constant 0 : index
    %c0_65 = arith.constant 0 : index
    %144 = vector.load %arg7[%c0_63, %c0_64, %c0_65] : memref<2x8x256xf32, #tpu.memory_space<vmem>>, vector<1x8x256xf32>
    %145 = vector.shape_cast %144 : vector<1x8x256xf32> to vector<8x256xf32>
    %146 = vector.shape_cast %143 : vector<8x256xf32> to vector<1x8x256xf32>
    tpu.vector_store %arg7[%c0_63, %c0_64, %c0_65], %146 {strides = array<i32>} : memref<2x8x256xf32, #tpu.memory_space<vmem>>, vector<1x8x256xf32>,
    %147 = vector.extract_strided_slice %139 {offsets = [1, 0, 0], sizes = [1, 4, 256], strides = [1, 1, 1]} : vector<2x4x256xf32> to vector<1x4x256xf32>
    %148 = vector.shape_cast %147 : vector<1x4x256xf32> to vector<4x256xf32>
    %cst_66 = arith.constant dense<0.000000e+00> : vector<8x256xf32>
    %149 = tpu.matmul %140, %148, %cst_66 {dimension_numbers = #tpu.dot_dimension_numbers<[1], [0], [0], [1], [0, 0, 1, 1], [], []>} : vector<8x4xf32>, vector<4x256xf32>, vector<8x256xf32> -> vector<8x256xf32>
    %c1_67 = arith.constant 1 : index
    %c0_68 = arith.constant 0 : index
    %c0_69 = arith.constant 0 : index
    %150 = vector.load %arg7[%c1_67, %c0_68, %c0_69] : memref<2x8x256xf32, #tpu.memory_space<vmem>>, vector<1x8x256xf32>
    %151 = vector.shape_cast %150 : vector<1x8x256xf32> to vector<8x256xf32>
    %152 = vector.shape_cast %149 : vector<8x256xf32> to vector<1x8x256xf32>
    tpu.vector_store %arg7[%c1_67, %c0_68, %c0_69], %152 {strides = array<i32>} : memref<2x8x256xf32, #tpu.memory_space<vmem>>, vector<1x8x256xf32>,
    return
  }
  func.func @transform_0(%arg0: i32) -> (i32, i32, i32) {
    %c0_i32 = arith.constant 0 : i32
    %c0_i32_0 = arith.constant 0 : i32
    %c0_i32_1 = arith.constant 0 : i32
    %c0_i32_2 = arith.constant 0 : i32
    return %c0_i32, %c0_i32_0, %c0_i32_1 : i32, i32, i32
  }
  func.func @transform_1(%arg0: i32) -> (i32, i32, i32) {
    %c0_i32 = arith.constant 0 : i32
    %c0_i32_0 = arith.constant 0 : i32
    %c0_i32_1 = arith.constant 0 : i32
    %c0_i32_2 = arith.constant 0 : i32
    return %c0_i32, %c0_i32_0, %c0_i32_1 : i32, i32, i32
  }
  func.func @transform_2(%arg0: i32) -> (i32, i32, i32) {
    %c0_i32 = arith.constant 0 : i32
    %c0_i32_0 = arith.constant 0 : i32
    %c0_i32_1 = arith.constant 0 : i32
    %c0_i32_2 = arith.constant 0 : i32
    return %c0_i32, %c0_i32_0, %c0_i32_1 : i32, i32, i32
  }
  func.func @transform_3(%arg0: i32) -> (i32, i32) {
    %c0_i32 = arith.constant 0 : i32
    %c0_i32_0 = arith.constant 0 : i32
    %c0_i32_1 = arith.constant 0 : i32
    return %c0_i32, %c0_i32_0 : i32, i32
  }
  func.func @transform_4(%arg0: i32) -> (i32, i32) {
    %c0_i32 = arith.constant 0 : i32
    %c0_i32_0 = arith.constant 0 : i32
    %c0_i32_1 = arith.constant 0 : i32
    return %c0_i32, %c0_i32_0 : i32, i32
  }
  func.func @transform_5(%arg0: i32) -> (i32, i32) {
    %c0_i32 = arith.constant 0 : i32
    %c0_i32_0 = arith.constant 0 : i32
    %c0_i32_1 = arith.constant 0 : i32
    return %c0_i32, %c0_i32_0 : i32, i32
  }
  func.func @transform_6(%arg0: i32) -> (i32, i32, i32) {
    %c0_i32 = arith.constant 0 : i32
    %c0_i32_0 = arith.constant 0 : i32
    %c0_i32_1 = arith.constant 0 : i32
    %c0_i32_2 = arith.constant 0 : i32
    return %c0_i32, %c0_i32_0, %c0_i32_1 : i32, i32, i32
  }
}

</mosaic_0001>

<llo_original>
// kernel: tpu_custom_call.1
$region0: #{tpu_custom_call.1}
  #allocation0 [shape = 'u32[]', space=smem, size = 0x4, offset = 0x4, fixed_abs, tag = 'smem constant byte address 0x4 - core index']
  #allocation1 [shape = 'u32[144,128]{1,0:T(1,128)}', space=vmem, size = 0x12000, scoped, tag = 'internal scratch']
  %s0 = inlined_call_operand.vmem [shape: f32[2,4,256], index: 0, kind: input, shape index: {}]
  %s1 = inlined_call_operand.vmem [shape: f32[9,4,1], index: 1, kind: input, shape index: {}]
  %s2 = inlined_call_operand.vmem [shape: f32[9,1,256], index: 2, kind: input, shape index: {}]
  %s3 = inlined_call_operand.vmem [shape: f32[4,1], index: 3, kind: input, shape index: {}]
  %s4 = inlined_call_operand.vmem [shape: f32[4,1], index: 4, kind: input, shape index: {}]
  %s5 = inlined_call_operand.vmem [shape: f32[8,4], index: 5, kind: input, shape index: {}]
  %s6 = inlined_call_operand.hbm [shape: f32[2,8,256], index: 6, kind: output, shape index: {}]
  %s7 = sld [smem:[#allocation0]]
  $region34: #{tpu_custom_call.1} parent=0
    _
  %s9 = ssub.s32 1, %s7
  %s10 = scalar_select 0, %s9, %s7
  $region1: #{tpu_custom_call.1} parent=0
    #allocation2 [shape = 'u8[16384]{0}', space=vmem, size = 0x4000, scoped, tag = 'output window, operand 0, single buffered']
    #allocation3 [shape = 's32[1]{0}', space=sflag, size = 0x4, scoped, tag = 'scoped memory for tpu_custom_call.1']
    %11 = vsyncpa [#allocation3], 0
    // Predicated region
    $region2: #{tpu_custom_call.1} parent=1 // pred_check
      _
    $region3: #{tpu_custom_call.1} parent=1 // pred_check_branch
      %13 = sbr.rel (0) target = $region5
    $region4: #{tpu_custom_call.1} parent=1 // pred_region
      _
    $region5: #{tpu_custom_call.1} parent=1 // pred_fallthru
      _
    // Predicated region
    $region6: #{tpu_custom_call.1} parent=1 // pred_check
      _
    $region7: #{tpu_custom_call.1} parent=1 // pred_check_branch
      %15 = sbr.rel (0) target = $region9
    $region8: #{tpu_custom_call.1} parent=1 // pred_region
      _
    $region9: #{tpu_custom_call.1} parent=1 // pred_fallthru
      _
    // Predicated region
    $region10: #{tpu_custom_call.1} parent=1 // pred_check
      _
    $region11: #{tpu_custom_call.1} parent=1 // pred_check_branch
      %17 = sbr.rel (0) target = $region13
    $region12: #{tpu_custom_call.1} parent=1 // pred_region
      _
    $region13: #{tpu_custom_call.1} parent=1 // pred_fallthru
      _
    // Predicated region
    $region14: #{tpu_custom_call.1} parent=1 // pred_check
      _
    $region15: #{tpu_custom_call.1} parent=1 // pred_check_branch
      %19 = sbr.rel (0) target = $region17
    $region16: #{tpu_custom_call.1} parent=1 // pred_region
      _
    $region17: #{tpu_custom_call.1} parent=1 // pred_fallthru
      _
    // Predicated region
    $region18: #{tpu_custom_call.1} parent=1 // pred_check
      _
    $region19: #{tpu_custom_call.1} parent=1 // pred_check_branch
      %21 = sbr.rel (0) target = $region21
    $region20: #{tpu_custom_call.1} parent=1 // pred_region
      _
    $region21: #{tpu_custom_call.1} parent=1 // pred_fallthru
      _
    // Predicated region
    $region22: #{tpu_custom_call.1} parent=1 // pred_check
      _
    $region23: #{tpu_custom_call.1} parent=1 // pred_check_branch
      %23 = sbr.rel (0) target = $region25
    $region24: #{tpu_custom_call.1} parent=1 // pred_region
      _
    $region25: #{tpu_custom_call.1} parent=1 // pred_fallthru
      _
    %v24 = vld [vmem:[%s0] sm:$0xff]
    %v25 = vld [vmem:[%s0 + $0x8] sm:$0xff]
    %v26 = vld [vmem:[%s2] sm:$0x3]
    %v27 = vld [vmem:[%s1] sm:$0xf]
    %v29 = vlaneseq
    %v30 = vshrl.u32 %v29, 7
    %v31 = vsub.s32 0, %v30
    %v32 = vrot.slane %v26, %v31
    %v33 = vlaneseq
    %v34 = vshrl.u32 %v33, 7
    %v35 = vsub.s32 1, %v34
    %v36 = vrot.slane %v26, %v35
    %40 = vset.pattern.permute.xlu0 0
    %41 = vperm.xlu0 %40, %v27
    %v42 = vpop.permute.xlu0 %41
    %v44 = vmul.f32 %v32, %v42
    %v45 = vmul.f32 %v36, %v42
    %v48 = vcombine.high %v24, %v24
    %v49 = vcombine.high %v25, %v25
    %52 = vrot.lane.b32.xlu0 %v24, 17
    %v53 = vpop.permute.xlu0 %52
    %54 = vrot.lane.b32.xlu0 %v25, 17
    %v55 = vpop.permute.xlu0 %54
    %56 = vrot.lane.b32.xlu0 %v48, 17
    %v57 = vpop.permute.xlu0 %56
    %58 = vrot.lane.b32.xlu0 %v49, 17
    %v59 = vpop.permute.xlu0 %58
    %v60 = vlaneseq
    %v61 = vand.u32 %v60, 127
    %vm62 = vcmp.lt.s32.totalorder %v61, 17
    %v63 = vsel %vm62, %v53, %v57
    %v64 = vsel %vm62, %v55, %v59
    %v65 = vsel %vm62, %v57, %v53
    %v66 = vsel %vm62, %v59, %v55
    %v67 = vmul.f32 %v65, %v44
    %v68 = vmul.f32 %v63, %v45
    %v69 = vmul.f32 %v66, %v44
    %v70 = vmul.f32 %v64, %v45
    %v71 = vadd.f32 %v67, 0.0
    %v72 = vadd.f32 %v68, 0.0
    %v73 = vadd.f32 %v69, 0.0
    %v74 = vadd.f32 %v70, 0.0
    %s75 = scalar_lea.vmem %s2, 2
    %v76 = vld [vmem:[%s75] sm:$0x3]
    %s77 = scalar_lea.vmem %s1, 4
    %v78 = vld [vmem:[%s77] sm:$0xf]
    %v80 = vlaneseq
    %v81 = vshrl.u32 %v80, 7
    %v82 = vsub.s32 0, %v81
    %v83 = vrot.slane %v76, %v82
    %v84 = vlaneseq
    %v85 = vshrl.u32 %v84, 7
    %v86 = vsub.s32 1, %v85
    %v87 = vrot.slane %v76, %v86
    %91 = vset.pattern.permute.xlu0 0
    %92 = vperm.xlu0 %91, %v78
    %v93 = vpop.permute.xlu0 %92
    %v95 = vmul.f32 %v83, %v93
    %v96 = vmul.f32 %v87, %v93
    %97 = vrot.lane.b32.xlu0 %v24, 16
    %v98 = vpop.permute.xlu0 %97
    %99 = vrot.lane.b32.xlu0 %v25, 16
    %v100 = vpop.permute.xlu0 %99
    %101 = vrot.lane.b32.xlu0 %v48, 16
    %v102 = vpop.permute.xlu0 %101
    %103 = vrot.lane.b32.xlu0 %v49, 16
    %v104 = vpop.permute.xlu0 %103
    %vm105 = vcmp.lt.s32.totalorder %v61, 16
    %v106 = vsel %vm105, %v98, %v102
    %v107 = vsel %vm105, %v100, %v104
    %v108 = vsel %vm105, %v102, %v98
    %v109 = vsel %vm105, %v104, %v100
    %v110 = vmul.f32 %v108, %v95
    %v111 = vmul.f32 %v106, %v96
    %v112 = vmul.f32 %v109, %v95
    %v113 = vmul.f32 %v107, %v96
    %v114 = vadd.f32 %v71, %v110
    %v115 = vadd.f32 %v72, %v111
    %v116 = vadd.f32 %v73, %v112
    %v117 = vadd.f32 %v74, %v113
    %s118 = scalar_lea.vmem %s2, 4
    %v119 = vld [vmem:[%s118] sm:$0x3]
    %s120 = scalar_lea.vmem %s1, 8
    %v121 = vld [vmem:[%s120] sm:$0xf]
    %v123 = vlaneseq
    %v124 = vshrl.u32 %v123, 7
    %v125 = vsub.s32 0, %v124
    %v126 = vrot.slane %v119, %v125
    %v127 = vlaneseq
    %v128 = vshrl.u32 %v127, 7
    %v129 = vsub.s32 1, %v128
    %v130 = vrot.slane %v119, %v129
    %134 = vset.pattern.permute.xlu0 0
    %135 = vperm.xlu0 %134, %v121
    %v136 = vpop.permute.xlu0 %135
    %v138 = vmul.f32 %v126, %v136
    %v139 = vmul.f32 %v130, %v136
    %140 = vrot.lane.b32.xlu0 %v24, 15
    %v141 = vpop.permute.xlu0 %140
    %142 = vrot.lane.b32.xlu0 %v25, 15
    %v143 = vpop.permute.xlu0 %142
    %144 = vrot.lane.b32.xlu0 %v48, 15
    %v145 = vpop.permute.xlu0 %144
    %146 = vrot.lane.b32.xlu0 %v49, 15
    %v147 = vpop.permute.xlu0 %146
    %vm148 = vcmp.lt.s32.totalorder %v61, 15
    %v149 = vsel %vm148, %v141, %v145
    %v150 = vsel %vm148, %v143, %v147
    %v151 = vsel %vm148, %v145, %v141
    %v152 = vsel %vm148, %v147, %v143
    %v153 = vmul.f32 %v151, %v138
    %v154 = vmul.f32 %v149, %v139
    %v155 = vmul.f32 %v152, %v138
    %v156 = vmul.f32 %v150, %v139
    %v157 = vadd.f32 %v114, %v153
    %v158 = vadd.f32 %v115, %v154
    %v159 = vadd.f32 %v116, %v155
    %v160 = vadd.f32 %v117, %v156
    %s161 = scalar_lea.vmem %s2, 6
    %v162 = vld [vmem:[%s161] sm:$0x3]
    %s163 = scalar_lea.vmem %s1, 12
    %v164 = vld [vmem:[%s163] sm:$0xf]
    %v166 = vlaneseq
    %v167 = vshrl.u32 %v166, 7
    %v168 = vsub.s32 0, %v167
    %v169 = vrot.slane %v162, %v168
    %v170 = vlaneseq
    %v171 = vshrl.u32 %v170, 7
    %v172 = vsub.s32 1, %v171
    %v173 = vrot.slane %v162, %v172
    %177 = vset.pattern.permute.xlu0 0
    %178 = vperm.xlu0 %177, %v164
    %v179 = vpop.permute.xlu0 %178
    %v181 = vmul.f32 %v169, %v179
    %v182 = vmul.f32 %v173, %v179
    %183 = vrot.lane.b32.xlu0 %v24, 1
    %v184 = vpop.permute.xlu0 %183
    %185 = vrot.lane.b32.xlu0 %v25, 1
    %v186 = vpop.permute.xlu0 %185
    %187 = vrot.lane.b32.xlu0 %v48, 1
    %v188 = vpop.permute.xlu0 %187
    %189 = vrot.lane.b32.xlu0 %v49, 1
    %v190 = vpop.permute.xlu0 %189
    %vm191 = vcmp.lt.s32.totalorder %v61, 1
    %v192 = vsel %vm191, %v184, %v188
    %v193 = vsel %vm191, %v186, %v190
    %v194 = vsel %vm191, %v188, %v184
    %v195 = vsel %vm191, %v190, %v186
    %v196 = vmul.f32 %v194, %v181
    %v197 = vmul.f32 %v192, %v182
    %v198 = vmul.f32 %v195, %v181
    %v199 = vmul.f32 %v193, %v182
    %v200 = vadd.f32 %v157, %v196
    %v201 = vadd.f32 %v158, %v197
    %v202 = vadd.f32 %v159, %v198
    %v203 = vadd.f32 %v160, %v199
    %s204 = scalar_lea.vmem %s2, 8
    %v205 = vld [vmem:[%s204] sm:$0x3]
    %s206 = scalar_lea.vmem %s1, 16
    %v207 = vld [vmem:[%s206] sm:$0xf]
    %v209 = vlaneseq
    %v210 = vshrl.u32 %v209, 7
    %v211 = vsub.s32 0, %v210
    %v212 = vrot.slane %v205, %v211
    %v213 = vlaneseq
    %v214 = vshrl.u32 %v213, 7
    %v215 = vsub.s32 1, %v214
    %v216 = vrot.slane %v205, %v215
    %220 = vset.pattern.permute.xlu0 0
    %221 = vperm.xlu0 %220, %v207
    %v222 = vpop.permute.xlu0 %221
    %v224 = vmul.f32 %v212, %v222
    %v225 = vmul.f32 %v216, %v222
    %v228 = vcombine.low %v224, %v225
    %v230 = vmul.f32 %v24, %v228
    %v231 = vmul.f32 %v25, %v228
    %v234 = vcombine.high %v230, %v230
    %v235 = vcombine.high %v231, %v231
    %v238 = vadd.f32 %v200, %v230
    %v239 = vadd.f32 %v201, %v234
    %v240 = vadd.f32 %v202, %v231
    %v241 = vadd.f32 %v203, %v235
    %s242 = scalar_lea.vmem %s2, 10
    %v243 = vld [vmem:[%s242] sm:$0x3]
    %s244 = scalar_lea.vmem %s1, 20
    %v245 = vld [vmem:[%s244] sm:$0xf]
    %v247 = vlaneseq
    %v248 = vshrl.u32 %v247, 7
    %v249 = vsub.s32 0, %v248
    %v250 = vrot.slane %v243, %v249
    %v251 = vlaneseq
    %v252 = vshrl.u32 %v251, 7
    %v253 = vsub.s32 1, %v252
    %v254 = vrot.slane %v243, %v253
    %258 = vset.pattern.permute.xlu0 0
    %259 = vperm.xlu0 %258, %v245
    %v260 = vpop.permute.xlu0 %259
    %v262 = vmul.f32 %v250, %v260
    %v263 = vmul.f32 %v254, %v260
    %264 = vrot.lane.b32.xlu0 %v24, 127
    %v265 = vpop.permute.xlu0 %264
    %266 = vrot.lane.b32.xlu0 %v25, 127
    %v267 = vpop.permute.xlu0 %266
    %268 = vrot.lane.b32.xlu0 %v48, 127
    %v269 = vpop.permute.xlu0 %268
    %270 = vrot.lane.b32.xlu0 %v49, 127
    %v271 = vpop.permute.xlu0 %270
    %vm272 = vcmp.lt.s32.totalorder %v61, 127
    %v273 = vsel %vm272, %v265, %v269
    %v274 = vsel %vm272, %v267, %v271
    %v275 = vsel %vm272, %v269, %v265
    %v276 = vsel %vm272, %v271, %v267
    %v277 = vmul.f32 %v273, %v262
    %v278 = vmul.f32 %v275, %v263
    %v279 = vmul.f32 %v274, %v262
    %v280 = vmul.f32 %v276, %v263
    %v281 = vadd.f32 %v238, %v277
    %v282 = vadd.f32 %v239, %v278
    %v283 = vadd.f32 %v240, %v279
    %v284 = vadd.f32 %v241, %v280
    %s285 = scalar_lea.vmem %s2, 12
    %v286 = vld [vmem:[%s285] sm:$0x3]
    %s287 = scalar_lea.vmem %s1, 24
    %v288 = vld [vmem:[%s287] sm:$0xf]
    %v290 = vlaneseq
    %v291 = vshrl.u32 %v290, 7
    %v292 = vsub.s32 0, %v291
    %v293 = vrot.slane %v286, %v292
    %v294 = vlaneseq
    %v295 = vshrl.u32 %v294, 7
    %v296 = vsub.s32 1, %v295
    %v297 = vrot.slane %v286, %v296
    %301 = vset.pattern.permute.xlu0 0
    %302 = vperm.xlu0 %301, %v288
    %v303 = vpop.permute.xlu0 %302
    %v305 = vmul.f32 %v293, %v303
    %v306 = vmul.f32 %v297, %v303
    %307 = vrot.lane.b32.xlu0 %v24, 113
    %v308 = vpop.permute.xlu0 %307
    %309 = vrot.lane.b32.xlu0 %v25, 113
    %v310 = vpop.permute.xlu0 %309
    %311 = vrot.lane.b32.xlu0 %v48, 113
    %v312 = vpop.permute.xlu0 %311
    %313 = vrot.lane.b32.xlu0 %v49, 113
    %v314 = vpop.permute.xlu0 %313
    %vm315 = vcmp.lt.s32.totalorder %v61, 113
    %v316 = vsel %vm315, %v308, %v312
    %v317 = vsel %vm315, %v310, %v314
    %v318 = vsel %vm315, %v312, %v308
    %v319 = vsel %vm315, %v314, %v310
    %v320 = vmul.f32 %v316, %v305
    %v321 = vmul.f32 %v318, %v306
    %v322 = vmul.f32 %v317, %v305
    %v323 = vmul.f32 %v319, %v306
    %v324 = vadd.f32 %v281, %v320
    %v325 = vadd.f32 %v282, %v321
    %v326 = vadd.f32 %v283, %v322
    %v327 = vadd.f32 %v284, %v323
    %s328 = scalar_lea.vmem %s2, 14
    %v329 = vld [vmem:[%s328] sm:$0x3]
    %s330 = scalar_lea.vmem %s1, 28
    %v331 = vld [vmem:[%s330] sm:$0xf]
    %v333 = vlaneseq
    %v334 = vshrl.u32 %v333, 7
    %v335 = vsub.s32 0, %v334
    %v336 = vrot.slane %v329, %v335
    %v337 = vlaneseq
    %v338 = vshrl.u32 %v337, 7
    %v339 = vsub.s32 1, %v338
    %v340 = vrot.slane %v329, %v339
    %344 = vset.pattern.permute.xlu0 0
    %345 = vperm.xlu0 %344, %v331
    %v346 = vpop.permute.xlu0 %345
    %v348 = vmul.f32 %v336, %v346
    %v349 = vmul.f32 %v340, %v346
    %350 = vrot.lane.b32.xlu0 %v24, 112
    %v351 = vpop.permute.xlu0 %350
    %352 = vrot.lane.b32.xlu0 %v25, 112
    %v353 = vpop.permute.xlu0 %352
    %354 = vrot.lane.b32.xlu0 %v48, 112
    %v355 = vpop.permute.xlu0 %354
    %356 = vrot.lane.b32.xlu0 %v49, 112
    %v357 = vpop.permute.xlu0 %356
    %vm358 = vcmp.lt.s32.totalorder %v61, 112
    %v359 = vsel %vm358, %v351, %v355
    %v360 = vsel %vm358, %v353, %v357
    %v361 = vsel %vm358, %v355, %v351
    %v362 = vsel %vm358, %v357, %v353
    %v363 = vmul.f32 %v359, %v348
    %v364 = vmul.f32 %v361, %v349
    %v365 = vmul.f32 %v360, %v348
    %v366 = vmul.f32 %v362, %v349
    %v367 = vadd.f32 %v324, %v363
    %v368 = vadd.f32 %v325, %v364
    %v369 = vadd.f32 %v326, %v365
    %v370 = vadd.f32 %v327, %v366
    %s371 = scalar_lea.vmem %s2, 16
    %v372 = vld [vmem:[%s371] sm:$0x3]
    %s373 = scalar_lea.vmem %s1, 32
    %v374 = vld [vmem:[%s373] sm:$0xf]
    %v376 = vlaneseq
    %v377 = vshrl.u32 %v376, 7
    %v378 = vsub.s32 0, %v377
    %v379 = vrot.slane %v372, %v378
    %v380 = vlaneseq
    %v381 = vshrl.u32 %v380, 7
    %v382 = vsub.s32 1, %v381
    %v383 = vrot.slane %v372, %v382
    %387 = vset.pattern.permute.xlu0 0
    %388 = vperm.xlu0 %387, %v374
    %v389 = vpop.permute.xlu0 %388
    %v391 = vmul.f32 %v379, %v389
    %v392 = vmul.f32 %v383, %v389
    %393 = vrot.lane.b32.xlu0 %v24, 111
    %v394 = vpop.permute.xlu0 %393
    %395 = vrot.lane.b32.xlu0 %v25, 111
    %v396 = vpop.permute.xlu0 %395
    %397 = vrot.lane.b32.xlu0 %v48, 111
    %v398 = vpop.permute.xlu0 %397
    %399 = vrot.lane.b32.xlu0 %v49, 111
    %v400 = vpop.permute.xlu0 %399
    %vm401 = vcmp.lt.s32.totalorder %v61, 111
    %v402 = vsel %vm401, %v394, %v398
    %v403 = vsel %vm401, %v396, %v400
    %v404 = vsel %vm401, %v398, %v394
    %v405 = vsel %vm401, %v400, %v396
    %v406 = vmul.f32 %v402, %v391
    %v407 = vmul.f32 %v404, %v392
    %v408 = vmul.f32 %v403, %v391
    %v409 = vmul.f32 %v405, %v392
    %v410 = vadd.f32 %v367, %v406
    %v411 = vadd.f32 %v368, %v407
    %v412 = vadd.f32 %v369, %v408
    %v413 = vadd.f32 %v370, %v409
    %vm414 = vcmask 1043456
    %v415 = vsel %vm414, %v410, 0.0
    %v416 = vsel %vm414, %v411, 0.0
    %v417 = vadd.f32 %v415, %v416
    %418 = vadd.xlane.f32.xlu0 %v417
    %v419 = vpop.xlane.xlu0 %418
    %v420 = vsel %vm414, %v412, 0.0
    %v421 = vsel %vm414, %v413, 0.0
    %v422 = vadd.f32 %v420, %v421
    %423 = vadd.xlane.f32.xlu0 %v422
    %v424 = vpop.xlane.xlu0 %423
    %v425 = vsel %vm414, %v419, 0.0
    %v426 = vsel %vm414, %v424, 0.0
    %v427 = vadd.f32 %v425, %v426
    %v428 = vmul.f32 %v410, %v410
    %v429 = vmul.f32 %v411, %v411
    %v430 = vmul.f32 %v412, %v412
    %v431 = vmul.f32 %v413, %v413
    %v432 = vsel %vm414, %v428, 0.0
    %v433 = vsel %vm414, %v429, 0.0
    %v434 = vadd.f32 %v432, %v433
    %435 = vadd.xlane.f32.xlu0 %v434
    %v436 = vpop.xlane.xlu0 %435
    %v437 = vsel %vm414, %v430, 0.0
    %v438 = vsel %vm414, %v431, 0.0
    %v439 = vadd.f32 %v437, %v438
    %440 = vadd.xlane.f32.xlu0 %v439
    %v441 = vpop.xlane.xlu0 %440
    %v442 = vsel %vm414, %v436, 0.0
    %v443 = vsel %vm414, %v441, 0.0
    %v444 = vadd.f32 %v442, %v443
    %v445 = vmul.f32 %v427, 0.001953125
    %v446 = vmul.f32 %v444, 0.001953125
    %v447 = vmul.f32 %v445, %v445
    %v448 = vsub.f32 %v446, %v447
    %v449 = vmax.f32 %v448, 0.0
    %v450 = vld [vmem:[%s3] sm:$0xf]
    %v451 = vadd.f32 %v449, 1e-05
    %v452 = vrsqrt.pop %v451
    %v453 = vmul.f32 %v450, %v452
    %v454 = vld [vmem:[%s4] sm:$0xf]
    %v455 = vmul.f32 %v445, %v453
    %v456 = vsub.f32 %v454, %v455
    %458 = vset.pattern.permute.xlu0 0
    %459 = vperm.xlu0 %458, %v453
    %v460 = vpop.permute.xlu0 %459
    %v462 = vmul.f32 %v410, %v460
    %v463 = vmul.f32 %v411, %v460
    %v464 = vmul.f32 %v412, %v460
    %v465 = vmul.f32 %v413, %v460
    %467 = vset.pattern.permute.xlu0 0
    %468 = vperm.xlu0 %467, %v456
    %v469 = vpop.permute.xlu0 %468
    %v471 = vadd.f32 %v462, %v469
    %v472 = vadd.f32 %v463, %v469
    %v473 = vadd.f32 %v464, %v469
    %v474 = vadd.f32 %v465, %v469
    %v475 = vld [vmem:[%s5] sm:$0xff]
    %vm476 = vcmask 31744
    %v478 = vsel %vm476, %v475, 0
    %v481 = vsel %vm414, %v471, 0
    %v484 = vsel %vm414, %v472, 0
    %486 = vmatprep.subr.mxu0 0.0
    %487 = vmatpush1.msra.mxu0 0.0
    %488 = vmatprep.subr.mxu0 0.0
    %489 = vmatpush1.msra.mxu0 0.0
    %490 = vmatprep.subr.mxu0 0.0
    %491 = vmatpush1.msra.mxu0 0.0
    %492 = vmatprep.subr.mxu0 0.0
    %493 = vmatpush1.msra.mxu0 0.0
    %494 = vmatprep.subr.mxu0 0.0
    %495 = vmatpush1.msra.mxu0 0.0
    %496 = vmatprep.subr.mxu0 0.0
    %497 = vmatpush1.msra.mxu0 0.0
    %498 = vmatprep.subr.mxu0 0.0
    %499 = vmatpush1.msra.mxu0 0.0
    %500 = vmatprep.subr.mxu0 0.0
    %501 = vmatpush1.msra.mxu0 0.0
    %502 = vmatprep.subr.mxu0 0.0
    %503 = vmatpush1.msra.mxu0 0.0
    %504 = vmatprep.subr.mxu0 0.0
    %505 = vmatpush1.msra.mxu0 0.0
    %506 = vmatprep.subr.mxu0 0.0
    %507 = vmatpush1.msra.mxu0 0.0
    %508 = vmatprep.subr.mxu0 0.0
    %509 = vmatpush1.msra.mxu0 0.0
    %510 = vmatprep.subr.mxu0 0.0
    %511 = vmatpush1.msra.mxu0 0.0
    %512 = vmatprep.subr.mxu0 0.0
    %513 = vmatpush1.msra.mxu0 0.0
    %514 = vmatprep.subr.mxu0 0.0
    %515 = vmatpush1.msra.mxu0 0.0
    %516 = vmatprep.subr.mxu0 %v484
    %517 = vmatpush1.msra.mxu0 %v481
    %518 = vmatprep.subr.mxu0 0.0
    %519 = vmatpush2.msra.mxu0 0.0
    %520 = vmatprep.subr.mxu0 0.0
    %521 = vmatpush2.msra.mxu0 0.0
    %522 = vmatprep.subr.mxu0 0.0
    %523 = vmatpush2.msra.mxu0 0.0
    %524 = vmatprep.subr.mxu0 0.0
    %525 = vmatpush2.msra.mxu0 0.0
    %526 = vmatprep.subr.mxu0 0.0
    %527 = vmatpush2.msra.mxu0 0.0
    %528 = vmatprep.subr.mxu0 0.0
    %529 = vmatpush2.msra.mxu0 0.0
    %530 = vmatprep.subr.mxu0 0.0
    %531 = vmatpush2.msra.mxu0 0.0
    %532 = vmatprep.subr.mxu0 0.0
    %533 = vmatpush2.msra.mxu0 0.0
    %534 = vmatprep.subr.mxu0 0.0
    %535 = vmatpush2.msra.mxu0 0.0
    %536 = vmatprep.subr.mxu0 0.0
    %537 = vmatpush2.msra.mxu0 0.0
    %538 = vmatprep.subr.mxu0 0.0
    %539 = vmatpush2.msra.mxu0 0.0
    %540 = vmatprep.subr.mxu0 0.0
    %541 = vmatpush2.msra.mxu0 0.0
    %542 = vmatprep.subr.mxu0 0.0
    %543 = vmatpush2.msra.mxu0 0.0
    %544 = vmatprep.subr.mxu0 0.0
    %545 = vmatpush2.msra.mxu0 0.0
    %546 = vmatprep.subr.mxu0 0.0
    %547 = vmatpush2.msra.mxu0 0.0
    %548 = vmatprep.subr.mxu0 0.0
    %549 = vmatpush2.msra.mxu0 0.0
    %550 = vmatprep.mubr.f32.mxu0 0.0
    %551 = vmatmul.mubr.f32.gmra.mxu0 %v478
    %v552 = vpop.f32.mrf.mxu0
    %v553 = vadd.f32 0.0, %v552
    %v554 = vpop.f32.mrf.mxu0
    %v555 = vadd.f32 0.0, %v554
    %556 = vdwg.mxu0
    %557 = vst [vmem:[#allocation2] sm:$0xff] %v553
    %558 = vst [vmem:[#allocation2 + $0x8] sm:$0xff] %v555
    %v560 = vsel %vm414, %v473, 0
    %v563 = vsel %vm414, %v474, 0
    %565 = vmatprep.subr.mxu0 0.0
    %566 = vmatpush1.msra.mxu0 0.0
    %567 = vmatprep.subr.mxu0 0.0
    %568 = vmatpush1.msra.mxu0 0.0
    %569 = vmatprep.subr.mxu0 0.0
    %570 = vmatpush1.msra.mxu0 0.0
    %571 = vmatprep.subr.mxu0 0.0
    %572 = vmatpush1.msra.mxu0 0.0
    %573 = vmatprep.subr.mxu0 0.0
    %574 = vmatpush1.msra.mxu0 0.0
    %575 = vmatprep.subr.mxu0 0.0
    %576 = vmatpush1.msra.mxu0 0.0
    %577 = vmatprep.subr.mxu0 0.0
    %578 = vmatpush1.msra.mxu0 0.0
    %579 = vmatprep.subr.mxu0 0.0
    %580 = vmatpush1.msra.mxu0 0.0
    %581 = vmatprep.subr.mxu0 0.0
    %582 = vmatpush1.msra.mxu0 0.0
    %583 = vmatprep.subr.mxu0 0.0
    %584 = vmatpush1.msra.mxu0 0.0
    %585 = vmatprep.subr.mxu0 0.0
    %586 = vmatpush1.msra.mxu0 0.0
    %587 = vmatprep.subr.mxu0 0.0
    %588 = vmatpush1.msra.mxu0 0.0
    %589 = vmatprep.subr.mxu0 0.0
    %590 = vmatpush1.msra.mxu0 0.0
    %591 = vmatprep.subr.mxu0 0.0
    %592 = vmatpush1.msra.mxu0 0.0
    %593 = vmatprep.subr.mxu0 0.0
    %594 = vmatpush1.msra.mxu0 0.0
    %595 = vmatprep.subr.mxu0 %v563
    %596 = vmatpush1.msra.mxu0 %v560
    %597 = vmatprep.subr.mxu0 0.0
    %598 = vmatpush2.msra.mxu0 0.0
    %599 = vmatprep.subr.mxu0 0.0
    %600 = vmatpush2.msra.mxu0 0.0
    %601 = vmatprep.subr.mxu0 0.0
    %602 = vmatpush2.msra.mxu0 0.0
    %603 = vmatprep.subr.mxu0 0.0
    %604 = vmatpush2.msra.mxu0 0.0
    %605 = vmatprep.subr.mxu0 0.0
    %606 = vmatpush2.msra.mxu0 0.0
    %607 = vmatprep.subr.mxu0 0.0
    %608 = vmatpush2.msra.mxu0 0.0
    %609 = vmatprep.subr.mxu0 0.0
    %610 = vmatpush2.msra.mxu0 0.0
    %611 = vmatprep.subr.mxu0 0.0
    %612 = vmatpush2.msra.mxu0 0.0
    %613 = vmatprep.subr.mxu0 0.0
    %614 = vmatpush2.msra.mxu0 0.0
    %615 = vmatprep.subr.mxu0 0.0
    %616 = vmatpush2.msra.mxu0 0.0
    %617 = vmatprep.subr.mxu0 0.0
    %618 = vmatpush2.msra.mxu0 0.0
    %619 = vmatprep.subr.mxu0 0.0
    %620 = vmatpush2.msra.mxu0 0.0
    %621 = vmatprep.subr.mxu0 0.0
    %622 = vmatpush2.msra.mxu0 0.0
    %623 = vmatprep.subr.mxu0 0.0
    %624 = vmatpush2.msra.mxu0 0.0
    %625 = vmatprep.subr.mxu0 0.0
    %626 = vmatpush2.msra.mxu0 0.0
    %627 = vmatprep.subr.mxu0 0.0
    %628 = vmatpush2.msra.mxu0 0.0
    %629 = vmatprep.mubr.f32.mxu0 0.0
    %630 = vmatmul.mubr.f32.gmra.mxu0 %v478
    %v631 = vpop.f32.mrf.mxu0
    %v632 = vadd.f32 0.0, %v631
    %v633 = vpop.f32.mrf.mxu0
    %v634 = vadd.f32 0.0, %v633
    %635 = vdwg.mxu0
    %s636 = scalar_lea.vmem [#allocation2], 16
    %637 = vst [vmem:[%s636] sm:$0xff] %v632
    %638 = vst [vmem:[%s636 + $0x8] sm:$0xff] %v634
    // Predicated region
    $region26: #{tpu_custom_call.1} parent=1 // pred_check
      _
    $region27: #{tpu_custom_call.1} parent=1 // pred_check_branch
      %640 = sbr.rel (0) target = $region29
    $region28: #{tpu_custom_call.1} parent=1 // pred_region
      %s642 = ssub.s32 512, 512
      %643 = vsyncadd [#allocation3], %s642
      %s644 = sshll.u32 [#allocation2], 4
      %s645 = int_to_ptr.vmem [resolvable:$true] %s644
      %650 = dma.vmem_to_hbm [thread:$0]  %s645, 512, %s6, [#allocation3], 256, 256, 16
    $region29: #{tpu_custom_call.1} parent=1 // pred_fallthru
      _
    // Predicated region
    $region30: #{tpu_custom_call.1} parent=1 // pred_check
      _
    $region31: #{tpu_custom_call.1} parent=1 // pred_check_branch
      %652 = sbr.rel (0) target = $region33
    $region32: #{tpu_custom_call.1} parent=1 // pred_region
      %653 = dma.done [#allocation3], 512
    $region33: #{tpu_custom_call.1} parent=1 // pred_fallthru
      _
    %654 = vsyncpa [#allocation3], 1

</llo_original>
